<compile_context>
chip_gen: v7x
topology: tpu7x:2x2x1
jax: 0.10.0
libtpu: 0.0.40
codegen_flags: <defaults>
</compile_context>

<pallas_src>
import math

import jax
import jax.numpy as jnp
from jax.experimental import pallas as pl
from jax.experimental.pallas import tpu as pltpu


def _dropsample_kernel(s_ref, x_ref, o_ref):
    # s_ref: (r_blk, 1) per-row scale = keep_mask / (1 - prob), in x's dtype.
    # x_ref / o_ref: (r_blk, L) lane-dense blocks of the flattened batch.
    o_ref[...] = (x_ref[...] + s_ref[...]).astype(o_ref.dtype)


def _divisors(n):
    out = set()
    d = 1
    while d * d <= n:
        if n % d == 0:
            out.add(d)
            out.add(n // d)
        d += 1
    return out


def _choose_lane(n, itemsize):
    """Lane width L: a divisor of the per-sample flat length n.

    Preference order:
      1. a multiple of 128 (lane-dense, unmasked vst), <= 2048;
      2. any divisor keeping one row within ~512 KiB (still a single HBM pass,
         just lane-sparse);
      3. None -> caller pads (rare: no usable divisor at all).
    """
    divs = _divisors(n)
    lane_dense = [d for d in divs if d % 128 == 0 and d <= 2048]
    if lane_dense:
        return max(lane_dense)
    max_l = max(1, (512 * 1024) // itemsize)
    best = max(d for d in divs if d <= max_l)
    if best >= 128:
        return best
    return None


def _choose_row_block(R, L, itemsize, target_bytes=2 * 1024 * 1024):
    """Rows per block: multiple of 8 (or == R), ~target_bytes, preferring an
    exact divisor of R, and leaving >= 4 grid steps when there is enough work
    (keeps both v7x TensorCores busy)."""
    if R <= 8:
        return R
    cap = max(8, min(R, (target_bytes // (L * itemsize)) // 8 * 8))
    if R >= 32:
        cap = min(cap, max(8, (R // 4) // 8 * 8))
    if cap >= R:
        return R
    cap -= cap % 8
    for blk in range(cap, 7, -8):
        if R % blk == 0:
            return blk
    return cap  # ragged last block; Pallas masks the final writeback


def drop_sample(x, *, prob=0.0, training=True, key=None, donate_x=False):
    """Pallas DropSample forward (matches the PyTorch module's forward).

    `prob` and `training` are static Python values (trace-time branch).
    Set donate_x=True only when the caller does not reuse x afterwards.
    """
    if prob == 0.0 or not training:
        return x
    if key is None:
        raise ValueError("key must be provided when prob > 0 and training")

    orig_shape = x.shape
    B = orig_shape[0]
    n = math.prod(orig_shape[1:])
    itemsize = jnp.dtype(x.dtype).itemsize

    # Per-sample Bernoulli keep scale (B scalars), same f32 math as reference.
    u = jax.random.uniform(key, (B,), dtype=jnp.float32)
    scale = (u > prob).astype(jnp.float32) / jnp.float32(1.0 - prob)

    # Lane width as a divisor of n -> pure (free) reshape, no pad/slice passes.
    L = _choose_lane(n, itemsize)
    pad = 0
    if L is None:
        # TODO(synk): n has no usable divisor (e.g. a large prime); fall back
        # to padding the flattened sample (costs one extra pad + slice pass).
        L = 128
        pad = (-n) % L
    n_pad = n + pad

    S = n_pad // L      # rows per sample
    R = B * S           # total rows; each row belongs to exactly one sample

    x_flat = x.reshape(B, n)
    if pad:
        x_flat = jnp.pad(x_flat, ((0, 0), (0, pad)))
    x2 = x_flat.reshape(R, L)

    # Per-row scale column in x's (floating) dtype -> native-dtype add in-kernel.
    col_dtype = x.dtype if jnp.issubdtype(x.dtype, jnp.floating) else jnp.float32
    scale_col = (
        jnp.broadcast_to(scale[:, None], (B, S)).reshape(R, 1).astype(col_dtype)
    )

    r_blk = _choose_row_block(R, L, itemsize)
    num_blocks = pl.cdiv(R, r_blk)
    block_bytes = r_blk * L * itemsize

    out2 = pl.pallas_call(
        _dropsample_kernel,
        out_shape=jax.ShapeDtypeStruct((R, L), x.dtype),
        grid=(num_blocks,),
        in_specs=[
            pl.BlockSpec((r_blk, 1), lambda i: (i, 0)),   # per-row scale column
            pl.BlockSpec((r_blk, L), lambda i: (i, 0)),   # x row block
        ],
        out_specs=pl.BlockSpec((r_blk, L), lambda i: (i, 0)),
        compiler_params=pltpu.CompilerParams(
            dimension_semantics=("parallel",),
            # Cover double-buffered (in + out) blocks plus the scale column
            # with headroom; stays well inside every generation's physical
            # VMEM (incl. v7x's 64 MiB) and only raises the scoped default
            # as far as needed.
            vmem_limit_bytes=int(
                min(48 * 1024 * 1024, max(16 * 1024 * 1024, 6 * block_bytes))
            ),
        ),
        cost_estimate=pl.CostEstimate(
            flops=R * L,
            transcendentals=0,
            bytes_accessed=2 * R * L * itemsize
            + R * jnp.dtype(col_dtype).itemsize,
        ),
        input_output_aliases=({1: 0} if donate_x else {}),
    )(scale_col, x2)

    out = out2.reshape(B, n_pad)
    if pad:
        out = out[:, :n]
    return out.reshape(orig_shape)


def _reference(x, prob, key):
    B = x.shape[0]
    u = jax.random.uniform(key, (B,), dtype=jnp.float32)
    keep_mask = (u > prob).astype(jnp.float32).reshape((B,) + (1,) * (x.ndim - 1))
    return x + (keep_mask / (1.0 - prob)).astype(x.dtype)


if __name__ == "__main__":
    key = jax.random.PRNGKey(0)
    kx, kmask, kx2, kmask2, kx3, kmask3 = jax.random.split(key, 6)
    prob = 0.25

    # Main case (shapes consistent with the MBConv feature maps): 128-aligned.
    B, C, H, W = 2, 4, 16, 16
    x = jax.random.normal(kx, (B, C, H, W), dtype=jnp.float32)
    out = jax.block_until_ready(drop_sample(x, prob=prob, training=True, key=kmask))
    assert jnp.allclose(out, _reference(x, prob, kmask), atol=1e-6), "mismatch (aligned)"

    # Multi-block path (several samples per block, >=4 grid steps).
    x_big = jax.random.normal(kx2, (16, 8, 32, 32), dtype=jnp.float32)
    out_big = jax.block_until_ready(
        drop_sample(x_big, prob=prob, training=True, key=kmask2)
    )
    assert jnp.allclose(out_big, _reference(x_big, prob, kmask2), atol=1e-6), \
        "mismatch (multi-block)"

    # Non-128-aligned per-sample length (single-pass, no pad/slice).
    x_odd = jax.random.normal(kx3, (8, 3, 8, 8), dtype=jnp.float32)
    out_odd = jax.block_until_ready(
        drop_sample(x_odd, prob=prob, training=True, key=kmask3)
    )
    assert jnp.allclose(out_odd, _reference(x_odd, prob, kmask3), atol=1e-6), \
        "mismatch (unaligned)"

    # Eval / prob==0 paths are identity.
    out_eval = jax.block_until_ready(drop_sample(x, prob=prob, training=False))
    assert jnp.array_equal(out_eval, x)
    out_p0 = jax.block_until_ready(drop_sample(x, prob=0.0, training=True, key=kmask))
    assert jnp.array_equal(out_p0, x)

    print("KERNEL_OK")
</pallas_src>

<mosaic_0001>
module attributes {stable_mosaic.version = 11 : i64} {
  func.func @_dropsample_kernel(%arg0: i32, %arg1: memref<2x1xf32, #tpu.memory_space<vmem>>, %arg2: memref<2x1024xf32, #tpu.memory_space<vmem>>, %arg3: memref<2x1024xf32, #tpu.memory_space<vmem>>) attributes {dimension_semantics = [#tpu.dimension_semantics<parallel>], iteration_bounds = array<i64: 1>, scalar_prefetch = 0 : i64, scratch_operands = 0 : i64, tpu.core_type = #tpu.core_type<tc>, window_params = [{transform_indices = @transform_0, window_bounds = array<i64: 2, 1>}, {transform_indices = @transform_1, window_bounds = array<i64: 2, 1024>}, {transform_indices = @transform_2, window_bounds = array<i64: 2, 1024>}]} {
    %c0 = arith.constant 0 : index
    %c0_0 = arith.constant 0 : index
    %0 = vector.load %arg2[%c0, %c0_0] : memref<2x1024xf32, #tpu.memory_space<vmem>>, vector<2x1024xf32>
    %c0_1 = arith.constant 0 : index
    %c0_2 = arith.constant 0 : index
    %1 = vector.load %arg1[%c0_1, %c0_2] : memref<2x1xf32, #tpu.memory_space<vmem>>, vector<2x1xf32>
    %2 = vector.broadcast %1 : vector<2x1xf32> to vector<2x1024xf32>
    %3 = arith.addf %0, %2 : vector<2x1024xf32>
    %c0_3 = arith.constant 0 : index
    %c0_4 = arith.constant 0 : index
    %4 = vector.load %arg3[%c0_3, %c0_4] : memref<2x1024xf32, #tpu.memory_space<vmem>>, vector<2x1024xf32>
    tpu.vector_store %arg3[%c0_3, %c0_4], %3 {strides = array<i32>} : memref<2x1024xf32, #tpu.memory_space<vmem>>, vector<2x1024xf32>,
    return
  }
  func.func @transform_0(%arg0: i32) -> (i32, i32) {
    %c0_i32 = arith.constant 0 : i32
    %c0_i32_0 = arith.constant 0 : i32
    return %arg0, %c0_i32 : i32, i32
  }
  func.func @transform_1(%arg0: i32) -> (i32, i32) {
    %c0_i32 = arith.constant 0 : i32
    %c0_i32_0 = arith.constant 0 : i32
    return %arg0, %c0_i32 : i32, i32
  }
  func.func @transform_2(%arg0: i32) -> (i32, i32) {
    %c0_i32 = arith.constant 0 : i32
    %c0_i32_0 = arith.constant 0 : i32
    return %arg0, %c0_i32 : i32, i32
  }
}

</mosaic_0001>

<llo_original>
// kernel: tpu_custom_call.1
$region0: #{tpu_custom_call.1}
  #allocation0 [shape = 'u32[]', space=smem, size = 0x4, offset = 0x4, fixed_abs, tag = 'smem constant byte address 0x4 - core index']
  #allocation1 [shape = 'u32[144,128]{1,0:T(1,128)}', space=vmem, size = 0x12000, scoped, tag = 'internal scratch']
  %s0 = inlined_call_operand.vmem [shape: f32[2,1], index: 0, kind: input, shape index: {}]
  %s1 = inlined_call_operand.hbm [shape: f32[2,1024], index: 1, kind: input, shape index: {}]
  %s2 = inlined_call_operand.hbm [shape: f32[2,1024], index: 2, kind: output, shape index: {}]
  %s3 = sld [smem:[#allocation0]]
  $region22: #{tpu_custom_call.1} parent=0
    _
  %s5 = ssub.s32 1, %s3
  %s6 = scalar_select 0, %s5, %s3
  $region1: #{tpu_custom_call.1} parent=0
    #allocation2 [shape = 'u8[8192]{0}', space=vmem, size = 0x2000, scoped, tag = 'input window, operand 1, single buffered']
    #allocation3 [shape = 's32[1]{0}', space=sflag, size = 0x4, scoped, tag = 'scoped memory for tpu_custom_call.1']
    #allocation4 [shape = 's32[1]{0}', space=sflag, size = 0x4, scoped, tag = 'scoped memory for tpu_custom_call.1']
    #allocation5 [shape = 'u8[8192]{0}', space=vmem, size = 0x2000, scoped, tag = 'output window, operand 0, single buffered']
    %7 = vsyncpa [#allocation3], 0
    %8 = vsyncpa [#allocation4], 0
    // Predicated region
    $region2: #{tpu_custom_call.1} parent=1 // pred_check
      _
    $region3: #{tpu_custom_call.1} parent=1 // pred_check_branch
      %10 = sbr.rel (0) target = $region5
    $region4: #{tpu_custom_call.1} parent=1 // pred_region
      _
    $region5: #{tpu_custom_call.1} parent=1 // pred_fallthru
      _
    // Predicated region
    $region6: #{tpu_custom_call.1} parent=1 // pred_check
      _
    $region7: #{tpu_custom_call.1} parent=1 // pred_check_branch
      %12 = sbr.rel (0) target = $region9
    $region8: #{tpu_custom_call.1} parent=1 // pred_region
      %s14 = ssub.s32 256, 256
      %15 = vsyncadd [#allocation3], %s14
      %s17 = sshll.u32 [#allocation2], 4
      %s18 = int_to_ptr.vmem [resolvable:$true] %s17
      %20 = dma.hbm_to_vmem [thread:$0]  %s1, 256, %s18, [#allocation3]
    $region9: #{tpu_custom_call.1} parent=1 // pred_fallthru
      _
    // Predicated region
    $region10: #{tpu_custom_call.1} parent=1 // pred_check
      _
    $region11: #{tpu_custom_call.1} parent=1 // pred_check_branch
      %22 = sbr.rel (0) target = $region13
    $region12: #{tpu_custom_call.1} parent=1 // pred_region
      %23 = dma.done [#allocation3], 256
    $region13: #{tpu_custom_call.1} parent=1 // pred_fallthru
      _
    %v24 = vld [vmem:[#allocation2] sm:$0xff]
    %v25 = vld [vmem:[#allocation2 + $0x8] sm:$0xff]
    %v26 = vld [vmem:[%s0] sm:$0x3]
    %28 = vset.pattern.permute.xlu0 0
    %29 = vperm.xlu0 %28, %v26
    %v30 = vpop.permute.xlu0 %29
    %v32 = vunpack.c.l.s4 269488144
    %v33 = vunpack.c.0.s8 %v32
    %v34 = vlaneseq
    %v35 = vshrl.u32 %v34, 7
    %v36 = vsub.s32 %v33, %v35
    %v37 = vrot.slane %v30, %v36
    %v39 = vadd.f32 %v24, %v37
    %v40 = vadd.f32 %v25, %v37
    %41 = vst [vmem:[#allocation5] sm:$0xff] %v39
    %42 = vst [vmem:[#allocation5 + $0x8] sm:$0xff] %v40
    // Predicated region
    $region14: #{tpu_custom_call.1} parent=1 // pred_check
      _
    $region15: #{tpu_custom_call.1} parent=1 // pred_check_branch
      %44 = sbr.rel (0) target = $region17
    $region16: #{tpu_custom_call.1} parent=1 // pred_region
      %s46 = ssub.s32 256, 256
      %47 = vsyncadd [#allocation4], %s46
      %s49 = sshll.u32 [#allocation5], 4
      %s50 = int_to_ptr.vmem [resolvable:$true] %s49
      %52 = dma.vmem_to_hbm [thread:$0]  %s50, 256, %s2, [#allocation4]
    $region17: #{tpu_custom_call.1} parent=1 // pred_fallthru
      _
    // Predicated region
    $region18: #{tpu_custom_call.1} parent=1 // pred_check
      _
    $region19: #{tpu_custom_call.1} parent=1 // pred_check_branch
      %54 = sbr.rel (0) target = $region21
    $region20: #{tpu_custom_call.1} parent=1 // pred_region
      %55 = dma.done [#allocation4], 256
    $region21: #{tpu_custom_call.1} parent=1 // pred_fallthru
      _
    %56 = vsyncpa [#allocation3], 1
    %57 = vsyncpa [#allocation4], 1

</llo_original>
